<compile_context>
chip_gen: v6e
topology: v6e:2x2x1
jax: 0.10.0
libtpu: 0.0.40
codegen_flags: <defaults>
</compile_context>

<pallas_src>
import jax
import jax.numpy as jnp
from jax.experimental import pallas as pl
from jax.experimental.pallas import tpu as pltpu


def _eup_sigmoid(x):
    # sigmoid(x) = 0.5 * (tanh(x/2) + 1): tanh runs on the EUP slot, the rest
    # is 3 cheap VALU ops; avoids the exact-divide lowering of 1/(1+exp(-x)).
    return 0.5 * (jnp.tanh(0.5 * x) + 1.0)


def _make_canet_kernel(tb, h, w_dim, activation_fn, apply_clamp):
    """Kernel for a (tb, h, w_dim) f32 block (spatial dims = full array dims)."""

    def kernel(w_ref, b_ref, x_ref, o_ref):
        # w_ref: SMEM (9,) f32 (row-major 3x3 taps); b_ref: SMEM (1,) f32
        # x_ref, o_ref: VMEM (tb, h, w_dim) f32
        x = x_ref[...]

        # Column-shifted (lane axis, XLU roll) neighbor views.  The circular
        # wrap at the edges is zeroed by the masked weight vectors below, so
        # column boundary handling costs zero extra VALU ops per element.
        x_w = pltpu.roll(x, 1, axis=2)            # x_w[..., j] = x[..., j-1]
        x_e = pltpu.roll(x, w_dim - 1, axis=2)    # x_e[..., j] = x[..., j+1]

        # Tiny boundary masks (built from small iotas, not block-sized ones).
        col = jax.lax.broadcasted_iota(jnp.int32, (1, 1, w_dim), 2)
        m_w = (col != 0).astype(jnp.float32)              # kill wrap at j == 0
        m_e = (col != w_dim - 1).astype(jnp.float32)      # kill wrap at j == W-1
        row = jax.lax.broadcasted_iota(jnp.int32, (1, h, 1), 1)
        m_top = (row != 0).astype(jnp.float32)            # kill wrap at i == 0
        m_bot = (row != h - 1).astype(jnp.float32)        # kill wrap at i == H-1

        # Scalar weights / bias (SMEM -> sreg), hoisted above the band math.
        wk = [w_ref[k] for k in range(9)]

        def band(di):
            # Column-boundary masks are folded into (1,1,W) weight vectors.
            return ((wk[3 * di] * m_w) * x_w
                    + wk[3 * di + 1] * x
                    + (wk[3 * di + 2] * m_e) * x_e)

        # Middle-row taps initialise the accumulator directly (no zeros+add).
        acc = band(1)
        # Row i-1 taps: shift the weighted band down one sublane, zero row 0.
        acc = acc + pltpu.roll(band(0), 1, axis=1) * m_top
        # Row i+1 taps: shift up one sublane, zero the last row.
        acc = acc + pltpu.roll(band(2), h - 1, axis=1) * m_bot
        acc = acc + b_ref[0]

        out = activation_fn(acc)
        if apply_clamp:
            out = jnp.clip(out, 0.0, 1.0)
        o_ref[...] = out.astype(o_ref.dtype)

    return kernel


def canet_forward(x, weight, bias, *, activation="sigmoid",
                  vmem_block_bytes=4 * 1024 * 1024,
                  vmem_limit_bytes=48 * 1024 * 1024):
    """x: (B, 1, H, W) float32 NCHW. weight: (1,1,3,3) or (3,3). bias: (1,).

    activation: "sigmoid" (default, computed on the EUP, clamp skipped since
    sigmoid is already in [0,1]) or any JAX callable (clamped to [0,1]).
    """
    B, C, H, W = x.shape
    assert C == 1, "OriginalCANet uses in_channels == out_channels == 1"
    w_flat = jnp.asarray(weight, jnp.float32).reshape(-1)
    assert w_flat.shape == (9,)
    b_flat = jnp.asarray(bias, jnp.float32).reshape(-1)[:1]

    if activation == "sigmoid":
        act_fn, apply_clamp = _eup_sigmoid, False
    else:
        act_fn, apply_clamp = activation, True

    # Batch tile: as many images per grid step as fit the per-block budget,
    # but keep >= 2 grid steps when B >= 2 so the "parallel" batch axis can
    # shard across both TensorCores on v7x megacore.
    per_image_bytes = H * W * 4
    tb = max(1, min(B, vmem_block_bytes // per_image_bytes))
    if B >= 2:
        tb = min(tb, pl.cdiv(B, 2))
    grid = (pl.cdiv(B, tb),)
    # NOTE: if B % tb != 0 the last grid step reads a partially out-of-range
    # batch window; this is safe only because batch elements are independent
    # and out-of-range writes are masked (do not add cross-batch reductions
    # without revisiting this).
    # TODO(synk): for very large single images (tb == 1 blocks exceeding the
    # VMEM budget, esp. v7x's 64 MiB) add halo'd row-band tiling inside the
    # kernel (fori_loop over row chunks) so temporaries are chunk-sized.

    kernel = _make_canet_kernel(tb, H, W, act_fn, apply_clamp)
    out = pl.pallas_call(
        kernel,
        out_shape=jax.ShapeDtypeStruct((B, 1, H, W), x.dtype),
        grid=grid,
        in_specs=[
            pl.BlockSpec(memory_space=pltpu.MemorySpace.SMEM),   # weights (9,)
            pl.BlockSpec(memory_space=pltpu.MemorySpace.SMEM),   # bias (1,)
            # Spatial block dims equal the full array dims -> legal for any
            # H/W (no wrapper pad, no output crop, single HBM pass each way).
            pl.BlockSpec((tb, None, H, W), lambda b: (b, 0, 0, 0)),
        ],
        out_specs=pl.BlockSpec((tb, None, H, W), lambda b: (b, 0, 0, 0)),
        compiler_params=pltpu.CompilerParams(
            dimension_semantics=("parallel",),
            vmem_limit_bytes=vmem_limit_bytes),
    )(w_flat, b_flat, x)

    return out


def canet_reference(x, weight, bias, *, activation=jax.nn.sigmoid):
    """Pure-JAX reference for correctness checking."""
    w = jnp.asarray(weight, jnp.float32).reshape(1, 1, 3, 3)
    conv = jax.lax.conv_general_dilated(
        x, w, window_strides=(1, 1), padding="SAME",
        dimension_numbers=("NCHW", "OIHW", "NCHW"))
    conv = conv + jnp.asarray(bias, jnp.float32).reshape(1, 1, 1, 1)
    return jnp.clip(activation(conv), 0.0, 1.0)


if __name__ == "__main__":
    key = jax.random.PRNGKey(0)
    k_x, k_w, k_b = jax.random.split(key, 3)

    # Small Game-of-Life-style boards; W = 128 keeps the lane axis fully dense.
    B, C, H, W = 4, 1, 16, 128
    x = jax.random.bernoulli(k_x, 0.5, (B, C, H, W)).astype(jnp.float32)

    # Deterministic Conv2d(1, 1, 3) params; PyTorch default init bound 1/sqrt(9).
    bound = 1.0 / 3.0
    weight = jax.random.uniform(k_w, (1, 1, 3, 3), jnp.float32, -bound, bound)
    bias = jax.random.uniform(k_b, (1,), jnp.float32, -bound, bound)

    out = jax.block_until_ready(canet_forward(x, weight, bias))
    ref = jax.block_until_ready(canet_reference(x, weight, bias))

    assert out.shape == (B, C, H, W)
    # Tolerance allows for the tanh-form sigmoid vs. the exact-divide reference
    # (difference is bounded by the EUP tanh approximation, typically < 1e-6).
    err = float(jnp.max(jnp.abs(out - ref)))
    assert err < 1e-4, err
    print("KERNEL_OK")
</pallas_src>

<mosaic_0001>
module attributes {stable_mosaic.version = 11 : i64} {
  func.func @kernel(%arg0: i32, %arg1: memref<9xf32, #tpu.memory_space<smem>>, %arg2: memref<1xf32, #tpu.memory_space<smem>>, %arg3: memref<2x1x16x128xf32, #tpu.memory_space<vmem>>, %arg4: memref<2x1x16x128xf32, #tpu.memory_space<vmem>>) attributes {dimension_semantics = [#tpu.dimension_semantics<parallel>], iteration_bounds = array<i64: 2>, scalar_prefetch = 0 : i64, scratch_operands = 0 : i64, tpu.core_type = #tpu.core_type<tc>, window_params = [{transform_indices = @transform_0, window_bounds = array<i64: 9>}, {transform_indices = @transform_1, window_bounds = array<i64: 1>}, {transform_indices = @transform_2, window_bounds = array<i64: 2, 1, 16, 128>}, {transform_indices = @transform_3, window_bounds = array<i64: 2, 1, 16, 128>}]} {
    %c0 = arith.constant 0 : index
    %c0_0 = arith.constant 0 : index
    %c0_1 = arith.constant 0 : index
    %c0_2 = arith.constant 0 : index
    %0 = vector.load %arg3[%c0, %c0_0, %c0_1, %c0_2] : memref<2x1x16x128xf32, #tpu.memory_space<vmem>>, vector<2x1x16x128xf32>
    %1 = vector.shape_cast %0 : vector<2x1x16x128xf32> to vector<2x16x128xf32>
    %c1_i32 = arith.constant 1 : i32
    %2 = tpu.dynamic_rotate %1 by %c1_i32 dim 2 : vector<2x16x128xf32>, i32 -> vector<2x16x128xf32>
    %c127_i32 = arith.constant 127 : i32
    %3 = tpu.dynamic_rotate %1 by %c127_i32 dim 2 : vector<2x16x128xf32>, i32 -> vector<2x16x128xf32>
    %4 = tpu.iota {dimensions = array<i32: 2>} : vector<1x1x128xi32>
    %c0_i32 = arith.constant 0 : i32
    %5 = vector.broadcast %c0_i32 : i32 to vector<1x1x128xi32>
    %6 = arith.cmpi ne, %4, %5 : vector<1x1x128xi32>
    %7 = arith.extui %6 : vector<1x1x128xi1> to vector<1x1x128xi32>
    %8 = arith.sitofp %7 : vector<1x1x128xi32> to vector<1x1x128xf32>
    %c127_i32_3 = arith.constant 127 : i32
    %9 = vector.broadcast %c127_i32_3 : i32 to vector<1x1x128xi32>
    %10 = arith.cmpi ne, %4, %9 : vector<1x1x128xi32>
    %11 = arith.extui %10 : vector<1x1x128xi1> to vector<1x1x128xi32>
    %12 = arith.sitofp %11 : vector<1x1x128xi32> to vector<1x1x128xf32>
    %13 = tpu.iota {dimensions = array<i32: 1>} : vector<1x16x1xi32>
    %c0_i32_4 = arith.constant 0 : i32
    %14 = vector.broadcast %c0_i32_4 : i32 to vector<1x16x1xi32>
    %15 = arith.cmpi ne, %13, %14 : vector<1x16x1xi32>
    %16 = arith.extui %15 : vector<1x16x1xi1> to vector<1x16x1xi32>
    %17 = arith.sitofp %16 : vector<1x16x1xi32> to vector<1x16x1xf32>
    %c15_i32 = arith.constant 15 : i32
    %18 = vector.broadcast %c15_i32 : i32 to vector<1x16x1xi32>
    %19 = arith.cmpi ne, %13, %18 : vector<1x16x1xi32>
    %20 = arith.extui %19 : vector<1x16x1xi1> to vector<1x16x1xi32>
    %21 = arith.sitofp %20 : vector<1x16x1xi32> to vector<1x16x1xf32>
    %c0_5 = arith.constant 0 : index
    %22 = memref.load %arg1[%c0_5] : memref<9xf32, #tpu.memory_space<smem>>
    %c1 = arith.constant 1 : index
    %23 = memref.load %arg1[%c1] : memref<9xf32, #tpu.memory_space<smem>>
    %c2 = arith.constant 2 : index
    %24 = memref.load %arg1[%c2] : memref<9xf32, #tpu.memory_space<smem>>
    %c3 = arith.constant 3 : index
    %25 = memref.load %arg1[%c3] : memref<9xf32, #tpu.memory_space<smem>>
    %c4 = arith.constant 4 : index
    %26 = memref.load %arg1[%c4] : memref<9xf32, #tpu.memory_space<smem>>
    %c5 = arith.constant 5 : index
    %27 = memref.load %arg1[%c5] : memref<9xf32, #tpu.memory_space<smem>>
    %c6 = arith.constant 6 : index
    %28 = memref.load %arg1[%c6] : memref<9xf32, #tpu.memory_space<smem>>
    %c7 = arith.constant 7 : index
    %29 = memref.load %arg1[%c7] : memref<9xf32, #tpu.memory_space<smem>>
    %c8 = arith.constant 8 : index
    %30 = memref.load %arg1[%c8] : memref<9xf32, #tpu.memory_space<smem>>
    %31 = vector.broadcast %25 : f32 to vector<1x1x128xf32>
    %32 = arith.mulf %31, %8 : vector<1x1x128xf32>
    %33 = vector.broadcast %32 : vector<1x1x128xf32> to vector<2x16x128xf32>
    %34 = arith.mulf %33, %2 : vector<2x16x128xf32>
    %35 = vector.broadcast %26 : f32 to vector<2x16x128xf32>
    %36 = arith.mulf %35, %1 : vector<2x16x128xf32>
    %37 = arith.addf %34, %36 : vector<2x16x128xf32>
    %38 = vector.broadcast %27 : f32 to vector<1x1x128xf32>
    %39 = arith.mulf %38, %12 : vector<1x1x128xf32>
    %40 = vector.broadcast %39 : vector<1x1x128xf32> to vector<2x16x128xf32>
    %41 = arith.mulf %40, %3 : vector<2x16x128xf32>
    %42 = arith.addf %37, %41 : vector<2x16x128xf32>
    %43 = vector.broadcast %22 : f32 to vector<1x1x128xf32>
    %44 = arith.mulf %43, %8 : vector<1x1x128xf32>
    %45 = vector.broadcast %44 : vector<1x1x128xf32> to vector<2x16x128xf32>
    %46 = arith.mulf %45, %2 : vector<2x16x128xf32>
    %47 = vector.broadcast %23 : f32 to vector<2x16x128xf32>
    %48 = arith.mulf %47, %1 : vector<2x16x128xf32>
    %49 = arith.addf %46, %48 : vector<2x16x128xf32>
    %50 = vector.broadcast %24 : f32 to vector<1x1x128xf32>
    %51 = arith.mulf %50, %12 : vector<1x1x128xf32>
    %52 = vector.broadcast %51 : vector<1x1x128xf32> to vector<2x16x128xf32>
    %53 = arith.mulf %52, %3 : vector<2x16x128xf32>
    %54 = arith.addf %49, %53 : vector<2x16x128xf32>
    %c1_i32_6 = arith.constant 1 : i32
    %55 = tpu.dynamic_rotate %54 by %c1_i32_6 dim 1 : vector<2x16x128xf32>, i32 -> vector<2x16x128xf32>
    %56 = vector.broadcast %17 : vector<1x16x1xf32> to vector<2x16x128xf32>
    %57 = arith.mulf %55, %56 : vector<2x16x128xf32>
    %58 = arith.addf %42, %57 : vector<2x16x128xf32>
    %59 = vector.broadcast %28 : f32 to vector<1x1x128xf32>
    %60 = arith.mulf %59, %8 : vector<1x1x128xf32>
    %61 = vector.broadcast %60 : vector<1x1x128xf32> to vector<2x16x128xf32>
    %62 = arith.mulf %61, %2 : vector<2x16x128xf32>
    %63 = vector.broadcast %29 : f32 to vector<2x16x128xf32>
    %64 = arith.mulf %63, %1 : vector<2x16x128xf32>
    %65 = arith.addf %62, %64 : vector<2x16x128xf32>
    %66 = vector.broadcast %30 : f32 to vector<1x1x128xf32>
    %67 = arith.mulf %66, %12 : vector<1x1x128xf32>
    %68 = vector.broadcast %67 : vector<1x1x128xf32> to vector<2x16x128xf32>
    %69 = arith.mulf %68, %3 : vector<2x16x128xf32>
    %70 = arith.addf %65, %69 : vector<2x16x128xf32>
    %c15_i32_7 = arith.constant 15 : i32
    %71 = tpu.dynamic_rotate %70 by %c15_i32_7 dim 1 : vector<2x16x128xf32>, i32 -> vector<2x16x128xf32>
    %72 = vector.broadcast %21 : vector<1x16x1xf32> to vector<2x16x128xf32>
    %73 = arith.mulf %71, %72 : vector<2x16x128xf32>
    %74 = arith.addf %58, %73 : vector<2x16x128xf32>
    %c0_8 = arith.constant 0 : index
    %75 = memref.load %arg2[%c0_8] : memref<1xf32, #tpu.memory_space<smem>>
    %76 = vector.broadcast %75 : f32 to vector<2x16x128xf32>
    %77 = arith.addf %74, %76 : vector<2x16x128xf32>
    %cst = arith.constant 5.000000e-01 : f32
    %78 = vector.broadcast %cst : f32 to vector<2x16x128xf32>
    %79 = arith.mulf %78, %77 : vector<2x16x128xf32>
    %80 = math.tanh %79 : vector<2x16x128xf32>
    %cst_9 = arith.constant 1.000000e+00 : f32
    %81 = vector.broadcast %cst_9 : f32 to vector<2x16x128xf32>
    %82 = arith.addf %80, %81 : vector<2x16x128xf32>
    %cst_10 = arith.constant 5.000000e-01 : f32
    %83 = vector.broadcast %cst_10 : f32 to vector<2x16x128xf32>
    %84 = arith.mulf %83, %82 : vector<2x16x128xf32>
    %c0_11 = arith.constant 0 : index
    %c0_12 = arith.constant 0 : index
    %c0_13 = arith.constant 0 : index
    %c0_14 = arith.constant 0 : index
    %85 = vector.load %arg4[%c0_11, %c0_12, %c0_13, %c0_14] : memref<2x1x16x128xf32, #tpu.memory_space<vmem>>, vector<2x1x16x128xf32>
    %86 = vector.shape_cast %85 : vector<2x1x16x128xf32> to vector<2x16x128xf32>
    %87 = vector.shape_cast %84 : vector<2x16x128xf32> to vector<2x1x16x128xf32>
    tpu.vector_store %arg4[%c0_11, %c0_12, %c0_13, %c0_14], %87 {strides = array<i32>} : memref<2x1x16x128xf32, #tpu.memory_space<vmem>>, vector<2x1x16x128xf32>,
    return
  }
  func.func @transform_0(%arg0: i32) -> i32 {
    %c0_i32 = arith.constant 0 : i32
    %c0_i32_0 = arith.constant 0 : i32
    return %c0_i32 : i32
  }
  func.func @transform_1(%arg0: i32) -> i32 {
    %c0_i32 = arith.constant 0 : i32
    %c0_i32_0 = arith.constant 0 : i32
    return %c0_i32 : i32
  }
  func.func @transform_2(%arg0: i32) -> (i32, i32, i32, i32) {
    %c0_i32 = arith.constant 0 : i32
    %c0_i32_0 = arith.constant 0 : i32
    %c0_i32_1 = arith.constant 0 : i32
    %c0_i32_2 = arith.constant 0 : i32
    return %arg0, %c0_i32, %c0_i32_0, %c0_i32_1 : i32, i32, i32, i32
  }
  func.func @transform_3(%arg0: i32) -> (i32, i32, i32, i32) {
    %c0_i32 = arith.constant 0 : i32
    %c0_i32_0 = arith.constant 0 : i32
    %c0_i32_1 = arith.constant 0 : i32
    %c0_i32_2 = arith.constant 0 : i32
    return %arg0, %c0_i32, %c0_i32_0, %c0_i32_1 : i32, i32, i32, i32
  }
}

</mosaic_0001>

<llo_original>
// kernel: tpu_custom_call.1
$region0: #{tpu_custom_call.1}
  #allocation0 [shape = 'u32[]', space=smem, size = 0x4, offset = 0x4, fixed_abs, tag = 'smem constant byte address 0x4 - core index']
  #allocation1 [shape = 'u32[144,128]{1,0:T(1,128)}', space=vmem, size = 0x12000, scoped, tag = 'internal scratch']
  #allocation2 [shape = 'f32[1]{0:T(128)S(6)}', space=smem, size = 0x200, scoped, tag = 'scoped memory for tpu_custom_call.1']
  %s0 = inlined_call_operand.vmem [shape: f32[9], index: 0, kind: input, shape index: {}]
  %s1 = inlined_call_operand.<no memory space> [shape: f32[1], index: 1, kind: input, shape index: {}]
  %s2 = inlined_call_operand.hbm [shape: f32[4,1,16,128], index: 2, kind: input, shape index: {}]
  %s3 = inlined_call_operand.hbm [shape: f32[4,1,16,128], index: 3, kind: output, shape index: {}]
  %s4 = sld [smem:[#allocation0]]
  $region53: #{tpu_custom_call.1} parent=0
    _
  %s6 = ssub.s32 1, %s4
  %s7 = scalar_select 0, %s6, %s4
  %8 = sst [smem:[#allocation2]] %s1
  $region1: #{tpu_custom_call.1} parent=0
    #allocation3 [shape = 'u8[512]{0}', space=smem, size = 0x200, scoped, tag = 'input window, operand 0, single buffered']
    #allocation4 [shape = 's32[2]{0}', space=sflag, size = 0x8, scoped, tag = 'scoped memory for tpu_custom_call.1']
    #allocation5 [shape = 's32[2]{0}', space=sflag, size = 0x8, scoped, tag = 'scoped memory for tpu_custom_call.1']
    #allocation6 [shape = 's32[2]{0}', space=sflag, size = 0x8, scoped, tag = 'scoped memory for tpu_custom_call.1']
    #allocation7 [shape = 'u8[32768]{0}', space=vmem, size = 0x8000, scoped, tag = 'input window, operand 2']
    #allocation8 [shape = 'u8[32768]{0}', space=vmem, size = 0x8000, scoped, tag = 'output window, operand 0']
    %9 = vsyncpa [#allocation6], 0
    %10 = vsyncpa [#allocation4], 0
    %s11 = scalar_lea.sflag [#allocation4], 1
    %12 = vsyncpa %s11, 0
    %13 = vsyncpa [#allocation5], 0
    %s14 = scalar_lea.sflag [#allocation5], 1
    %15 = vsyncpa %s14, 0
    loop: start=0, step=1, limit=4
    $region2: #{tpu_custom_call.1} parent=1 // loop_pre_header
      _
    $region3: #{tpu_custom_call.1} parent=1 // loop_header
      %s17 = sphi 0, %s21
      %p18 = scmp.ge.s32.totalorder %s17, 4
      %s25 = sphi 0, %s25
      %s27 = sphi 0, %s25
      %s28 = sphi 0, %s27
      %s42 = sphi 0, %s28
      %s46 = sphi 0, %s46
      %s48 = sphi 0, %s46
      %s49 = sphi 0, %s48
      %s63 = sphi 0, %s49
      %s69 = sphi 0, %s71
      %s72 = sphi 0, %s69
      %s73 = sphi 0, %s72
      %s89 = sphi 0, %s73
      %s95 = sphi 0, %s97
      %s98 = sphi 0, %s95
      %s99 = sphi 0, %s98
      %s115 = sphi 0, %s99
    $region4: #{tpu_custom_call.1} parent=1 // loop_header_branch
      %20 = sbr.rel (%p18) target = $region8
    $region5: #{tpu_custom_call.1} parent=1 // loop_body
      %s22 = ssub.s32 %s17, 1
      %s23 = ssub.s32 %s17, 2
      %s24 = sadd.s32 %s17, 1
      %s26 = sadd.s32 %s25, 1
      %p29 = scmp.eq.s32.totalorder %s17, 1
      %p30 = scmp.ne.s32.totalorder %s25, %s27
      %p31 = scmp.eq.s32.totalorder %s17, 0
      %p32 = por %p30, %p31
      %p33 = scmp.ne.s32.totalorder %s25, %s27
      %p34 = scmp.eq.s32.totalorder %s22, 1
      %p35 = por %p33, %p34
      %p36 = scmp.ne.s32.totalorder %s27, %s28
      %p37 = scmp.eq.s32.totalorder %s22, 0
      %p38 = por %p36, %p37
      %p39 = scmp.ne.s32.totalorder %s27, %s28
      %p40 = scmp.eq.s32.totalorder %s23, 1
      %p41 = por %p39, %p40
      %p43 = scmp.ne.s32.totalorder %s28, %s42
      %p44 = scmp.eq.s32.totalorder %s23, 0
      %p45 = por %p43, %p44
      %s47 = sadd.s32 %s46, 1
      %p50 = scmp.eq.s32.totalorder %s17, 1
      %p51 = scmp.ne.s32.totalorder %s46, %s48
      %p52 = scmp.eq.s32.totalorder %s17, 0
      %p53 = por %p51, %p52
      %p54 = scmp.ne.s32.totalorder %s46, %s48
      %p55 = scmp.eq.s32.totalorder %s22, 1
      %p56 = por %p54, %p55
      %p57 = scmp.ne.s32.totalorder %s48, %s49
      %p58 = scmp.eq.s32.totalorder %s22, 0
      %p59 = por %p57, %p58
      %p60 = scmp.ne.s32.totalorder %s48, %s49
      %p61 = scmp.eq.s32.totalorder %s23, 1
      %p62 = por %p60, %p61
      %p64 = scmp.ne.s32.totalorder %s49, %s63
      %p65 = scmp.eq.s32.totalorder %s23, 0
      %p66 = por %p64, %p65
      %s67 = ssub.s32 %s17, %s24
      %p68 = scmp.eq.s32.totalorder %s67, 0
      %s70 = sadd.s32 %s69, 1
      %s71 = scalar_select %p68, %s69, %s70
      %p74 = pneg %p68
      %p75 = scmp.eq.s32.totalorder %s17, 1
      %p76 = por %p74, %p75
      %p77 = scmp.ne.s32.totalorder %s69, %s72
      %p78 = scmp.eq.s32.totalorder %s17, 0
      %p79 = por %p77, %p78
      %p80 = scmp.ne.s32.totalorder %s69, %s72
      %p81 = scmp.eq.s32.totalorder %s22, 1
      %p82 = por %p80, %p81
      %p83 = scmp.ne.s32.totalorder %s72, %s73
      %p84 = scmp.eq.s32.totalorder %s22, 0
      %p85 = por %p83, %p84
      %p86 = scmp.ne.s32.totalorder %s72, %s73
      %p87 = scmp.eq.s32.totalorder %s23, 1
      %p88 = por %p86, %p87
      %p90 = scmp.ne.s32.totalorder %s73, %s89
      %p91 = scmp.eq.s32.totalorder %s23, 0
      %p92 = por %p90, %p91
      %s93 = ssub.s32 %s17, %s24
      %p94 = scmp.eq.s32.totalorder %s93, 0
      %s96 = sadd.s32 %s95, 1
      %s97 = scalar_select %p94, %s95, %s96
      %p100 = pneg %p94
      %p101 = scmp.eq.s32.totalorder %s17, 1
      %p102 = por %p100, %p101
      %p103 = scmp.ne.s32.totalorder %s95, %s98
      %p104 = scmp.eq.s32.totalorder %s17, 0
      %p105 = por %p103, %p104
      %p106 = scmp.ne.s32.totalorder %s95, %s98
      %p107 = scmp.eq.s32.totalorder %s22, 1
      %p108 = por %p106, %p107
      %p109 = scmp.ne.s32.totalorder %s98, %s99
      %p110 = scmp.eq.s32.totalorder %s22, 0
      %p111 = por %p109, %p110
      %p112 = scmp.ne.s32.totalorder %s98, %s99
      %p113 = scmp.eq.s32.totalorder %s23, 1
      %p114 = por %p112, %p113
      %p116 = scmp.ne.s32.totalorder %s99, %s115
      %p117 = scmp.eq.s32.totalorder %s23, 0
      %p118 = por %p116, %p117
      %p119 = scmp.le.s32.totalorder 1, %s17
      %p120 = scmp.lt.s32.totalorder %s17, 3
      %p121 = pnand %p119, %p120
      %p122 = pneg %p121
      // Predicated region
      $region9: #{tpu_custom_call.1} parent=5 // pred_check
        _
      $region10: #{tpu_custom_call.1} parent=5 // pred_check_branch
        %124 = sbr.rel (%p121) target = $region12
      $region11: #{tpu_custom_call.1} parent=5 // pred_region
        %s125 = ssub.s32 %s17, 1
        // Predicated region
        $region13: #{tpu_custom_call.1} parent=11 // pred_check
          %p126 = pneg %p38
        $region14: #{tpu_custom_call.1} parent=11 // pred_check_branch
          %128 = sbr.rel (%p126) target = $region16
        $region15: #{tpu_custom_call.1} parent=11 // pred_region
          %s130 = ssub.s32 16, 16
          %131 = vsyncadd [#allocation6], %s130
          %s133 = sshll.u32 %s0, 4
          %s134 = int_to_ptr.vmem [resolvable:$true] %s133
          %136 = dma.vmem_to_smem %s134, 16, [#allocation3], [#allocation6]
        $region16: #{tpu_custom_call.1} parent=11 // pred_fallthru
          _
        // Predicated region
        $region17: #{tpu_custom_call.1} parent=11 // pred_check
          %p137 = pneg %p59
        $region18: #{tpu_custom_call.1} parent=11 // pred_check_branch
          %139 = sbr.rel (%p137) target = $region20
        $region19: #{tpu_custom_call.1} parent=11 // pred_region
          _
        $region20: #{tpu_custom_call.1} parent=11 // pred_fallthru
          _
      $region12: #{tpu_custom_call.1} parent=5 // pred_fallthru
        _
      %p140 = scmp.lt.s32.totalorder %s17, 2
      // Predicated region
      $region21: #{tpu_custom_call.1} parent=5 // pred_check
        %p141 = pneg %p140
      $region22: #{tpu_custom_call.1} parent=5 // pred_check_branch
        %143 = sbr.rel (%p141) target = $region24
      $region23: #{tpu_custom_call.1} parent=5 // pred_region
        // Predicated region
        $region25: #{tpu_custom_call.1} parent=23 // pred_check
          %p144 = pneg %p79
        $region26: #{tpu_custom_call.1} parent=23 // pred_check_branch
          %146 = sbr.rel (%p144) target = $region28
        $region27: #{tpu_custom_call.1} parent=23 // pred_region
          %s147 = sand.u32 %s69, 1
          %s148 = scalar_lea.sflag [#allocation4], %s147
          %s149 = sand.u32 %s69, 1
          %s150 = smul.addr %s149, 32
          %s151 = scalar_lea.vmem [#allocation7], %s150
          %s152 = smul.u32 2, %s17
          %s154 = ssub.s32 512, 512
          %155 = vsyncadd %s148, %s154
          %s156 = smul.addr %s152, 2
          %s157 = smul.addr %s156, 128
          %s158 = scalar_lea.hbm %s2, %s157
          %s159 = sshll.u32 %s151, 4
          %s160 = int_to_ptr.vmem [resolvable:$true] %s159
          %165 = dma.hbm_to_vmem [thread:$0]  %s158, 512, %s160, %s148, 128, 128, 8
        $region28: #{tpu_custom_call.1} parent=23 // pred_fallthru
          _
      $region24: #{tpu_custom_call.1} parent=5 // pred_fallthru
        _
      %p166 = scmp.le.s32.totalorder 1, %s17
      %p167 = scmp.lt.s32.totalorder %s17, 3
      %p168 = pnand %p166, %p167
      %p169 = pneg %p168
      // Predicated region
      $region29: #{tpu_custom_call.1} parent=5 // pred_check
        _
      $region30: #{tpu_custom_call.1} parent=5 // pred_check_branch
        %171 = sbr.rel (%p168) target = $region32
      $region31: #{tpu_custom_call.1} parent=5 // pred_region
        %s172 = ssub.s32 %s17, 1
        // Predicated region
        $region33: #{tpu_custom_call.1} parent=31 // pred_check
          %p173 = pneg %p38
        $region34: #{tpu_custom_call.1} parent=31 // pred_check_branch
          %175 = sbr.rel (%p173) target = $region36
        $region35: #{tpu_custom_call.1} parent=31 // pred_region
          %176 = dma.done [#allocation6], 16
        $region36: #{tpu_custom_call.1} parent=31 // pred_fallthru
          _
        %s177 = sand.u32 %s72, 1
        %s178 = scalar_lea.sflag [#allocation4], %s177
        %s179 = sand.u32 %s72, 1
        %s180 = smul.addr %s179, 32
        %s181 = scalar_lea.vmem [#allocation7], %s180
        // Predicated region
        $region37: #{tpu_custom_call.1} parent=31 // pred_check
          %p182 = pneg %p85
        $region38: #{tpu_custom_call.1} parent=31 // pred_check_branch
          %184 = sbr.rel (%p182) target = $region40
        $region39: #{tpu_custom_call.1} parent=31 // pred_region
          %185 = dma.done %s178, 512
        $region40: #{tpu_custom_call.1} parent=31 // pred_fallthru
          _
        %186 = sfence
        %p187 = pneg %p38
        %p188 = pneg %p35
        %p189 = pneg %p59
        %p190 = pneg %p56
        %s191 = sand.u32 %s72, 1
        %s192 = scalar_lea.sflag [#allocation4], %s191
        %s193 = sand.u32 %s72, 1
        %s194 = smul.addr %s193, 32
        %s195 = scalar_lea.vmem [#allocation7], %s194
        %p196 = pneg %p85
        %p197 = pneg %p82
        %p198 = pneg %p111
        %p199 = pneg %p108
        %s200 = sand.u32 %s98, 1
        %s201 = scalar_lea.sflag [#allocation5], %s200
        %s202 = sand.u32 %s98, 1
        %s203 = smul.addr %s202, 32
        %s204 = scalar_lea.vmem [#allocation8], %s203
        %s205 = smul.u32 2, %s22
        %s206 = smul.u32 2, %s22
        %v207 = vld [vmem:[%s181] sm:$0xff]
        %v208 = vld [vmem:[%s181 + $0x8] sm:$0xff]
        %v209 = vld [vmem:[%s181 + $0x10] sm:$0xff]
        %v210 = vld [vmem:[%s181 + $0x18] sm:$0xff]
        %211 = vrot.lane.b32.xlu0 %v207, 1
        %v212 = vpop.permute.xlu0 %211
        %213 = vrot.lane.b32.xlu0 %v208, 1
        %v214 = vpop.permute.xlu0 %213
        %215 = vrot.lane.b32.xlu0 %v209, 1
        %v216 = vpop.permute.xlu0 %215
        %217 = vrot.lane.b32.xlu0 %v210, 1
        %v218 = vpop.permute.xlu0 %217
        %219 = vrot.lane.b32.xlu0 %v207, 127
        %v220 = vpop.permute.xlu0 %219
        %221 = vrot.lane.b32.xlu0 %v208, 127
        %v222 = vpop.permute.xlu0 %221
        %223 = vrot.lane.b32.xlu0 %v209, 127
        %v224 = vpop.permute.xlu0 %223
        %225 = vrot.lane.b32.xlu0 %v210, 127
        %v226 = vpop.permute.xlu0 %225
        %v227 = vlaneseq
        %v228 = vand.u32 %v227, 127
        %vm229 = vcmp.ne.s32.totalorder %v228, 0
        %v230 = vsel %vm229, 1, 0
        %v231 = vcvt.s32.f32 %v230
        %vm232 = vcmp.ne.s32.totalorder %v228, 127
        %v233 = vsel %vm232, 1, 0
        %v234 = vcvt.s32.f32 %v233
        %v235 = vlaneseq
        %v236 = vshrl.u32 %v235, 7
        %v237 = vadd.s32 %v236, 8
        %vm238 = vcmp.ne.s32.totalorder %v236, 0
        %vm239 = vcmp.ne.s32.totalorder %v237, 0
        %v240 = vsel %vm238, 1, 0
        %v241 = vsel %vm239, 1, 0
        %v242 = vcvt.s32.f32 %v240
        %v243 = vcvt.s32.f32 %v241
        %vm244 = vcmp.ne.s32.totalorder %v236, 15
        %vm245 = vcmp.ne.s32.totalorder %v237, 15
        %v246 = vsel %vm244, 1, 0
        %v247 = vsel %vm245, 1, 0
        %v248 = vcvt.s32.f32 %v246
        %v249 = vcvt.s32.f32 %v247
        %s250 = sld [smem:[#allocation3]]
        %s251 = sld [smem:[#allocation3 + $0x1]]
        %s252 = sld [smem:[#allocation3 + $0x2]]
        %s253 = sld [smem:[#allocation3 + $0x3]]
        %s254 = sld [smem:[#allocation3 + $0x4]]
        %s255 = sld [smem:[#allocation3 + $0x5]]
        %s256 = sld [smem:[#allocation3 + $0x6]]
        %s257 = sld [smem:[#allocation3 + $0x7]]
        %s258 = sld [smem:[#allocation3 + $0x8]]
        %v259 = vstv %s253
        %v260 = vmul.f32 %v259, %v231
        %v261 = vmul.f32 %v260, %v212
        %v262 = vmul.f32 %v260, %v214
        %v263 = vmul.f32 %v260, %v216
        %v264 = vmul.f32 %v260, %v218
        %v265 = vstv %s254
        %v266 = vmul.f32 %v265, %v207
        %v267 = vmul.f32 %v265, %v208
        %v268 = vmul.f32 %v265, %v209
        %v269 = vmul.f32 %v265, %v210
        %v270 = vadd.f32 %v261, %v266
        %v271 = vadd.f32 %v262, %v267
        %v272 = vadd.f32 %v263, %v268
        %v273 = vadd.f32 %v264, %v269
        %v274 = vstv %s255
        %v275 = vmul.f32 %v274, %v234
        %v276 = vmul.f32 %v275, %v220
        %v277 = vmul.f32 %v275, %v222
        %v278 = vmul.f32 %v275, %v224
        %v279 = vmul.f32 %v275, %v226
        %v280 = vadd.f32 %v270, %v276
        %v281 = vadd.f32 %v271, %v277
        %v282 = vadd.f32 %v272, %v278
        %v283 = vadd.f32 %v273, %v279
        %v284 = vstv %s250
        %v285 = vmul.f32 %v284, %v231
        %v286 = vmul.f32 %v285, %v212
        %v287 = vmul.f32 %v285, %v214
        %v288 = vmul.f32 %v285, %v216
        %v289 = vmul.f32 %v285, %v218
        %v290 = vstv %s251
        %v291 = vmul.f32 %v290, %v207
        %v292 = vmul.f32 %v290, %v208
        %v293 = vmul.f32 %v290, %v209
        %v294 = vmul.f32 %v290, %v210
        %v295 = vadd.f32 %v286, %v291
        %v296 = vadd.f32 %v287, %v292
        %v297 = vadd.f32 %v288, %v293
        %v298 = vadd.f32 %v289, %v294
        %v299 = vstv %s252
        %v300 = vmul.f32 %v299, %v234
        %v301 = vmul.f32 %v300, %v220
        %v302 = vmul.f32 %v300, %v222
        %v303 = vmul.f32 %v300, %v224
        %v304 = vmul.f32 %v300, %v226
        %v305 = vadd.f32 %v295, %v301
        %v306 = vadd.f32 %v296, %v302
        %v307 = vadd.f32 %v297, %v303
        %v308 = vadd.f32 %v298, %v304
        %v309 = vrot.slane %v305, 7
        %v310 = vrot.slane %v307, 7
        %v311 = vrot.slane %v306, 7
        %v312 = vrot.slane %v308, 7
        %vm313 = vcmp.lt.s32.totalorder %v236, 1
        %v314 = vsel %vm313, %v309, %v311
        %v315 = vsel %vm313, %v310, %v312
        %v316 = vsel %vm313, %v311, %v309
        %v317 = vsel %vm313, %v312, %v310
        %v318 = vmul.f32 %v316, %v242
        %v319 = vmul.f32 %v314, %v243
        %v320 = vmul.f32 %v317, %v242
        %v321 = vmul.f32 %v315, %v243
        %v322 = vadd.f32 %v280, %v318
        %v323 = vadd.f32 %v281, %v319
        %v324 = vadd.f32 %v282, %v320
        %v325 = vadd.f32 %v283, %v321
        %v326 = vstv %s256
        %v327 = vmul.f32 %v326, %v231
        %v328 = vmul.f32 %v327, %v212
        %v329 = vmul.f32 %v327, %v214
        %v330 = vmul.f32 %v327, %v216
        %v331 = vmul.f32 %v327, %v218
        %v332 = vstv %s257
        %v333 = vmul.f32 %v332, %v207
        %v334 = vmul.f32 %v332, %v208
        %v335 = vmul.f32 %v332, %v209
        %v336 = vmul.f32 %v332, %v210
        %v337 = vadd.f32 %v328, %v333
        %v338 = vadd.f32 %v329, %v334
        %v339 = vadd.f32 %v330, %v335
        %v340 = vadd.f32 %v331, %v336
        %v341 = vstv %s258
        %v342 = vmul.f32 %v341, %v234
        %v343 = vmul.f32 %v342, %v220
        %v344 = vmul.f32 %v342, %v222
        %v345 = vmul.f32 %v342, %v224
        %v346 = vmul.f32 %v342, %v226
        %v347 = vadd.f32 %v337, %v343
        %v348 = vadd.f32 %v338, %v344
        %v349 = vadd.f32 %v339, %v345
        %v350 = vadd.f32 %v340, %v346
        %v351 = vrot.slane %v347, 1
        %v352 = vrot.slane %v349, 1
        %v353 = vrot.slane %v348, 1
        %v354 = vrot.slane %v350, 1
        %vm355 = vcmp.lt.s32.totalorder %v236, 7
        %v356 = vsel %vm355, %v351, %v353
        %v357 = vsel %vm355, %v352, %v354
        %v358 = vsel %vm355, %v353, %v351
        %v359 = vsel %vm355, %v354, %v352
        %v360 = vmul.f32 %v356, %v248
        %v361 = vmul.f32 %v358, %v249
        %v362 = vmul.f32 %v357, %v248
        %v363 = vmul.f32 %v359, %v249
        %v364 = vadd.f32 %v322, %v360
        %v365 = vadd.f32 %v323, %v361
        %v366 = vadd.f32 %v324, %v362
        %v367 = vadd.f32 %v325, %v363
        %s368 = sld [smem:[#allocation2]]
        %v369 = vstv %s368
        %v370 = vadd.f32 %v364, %v369
        %v371 = vadd.f32 %v365, %v369
        %v372 = vadd.f32 %v366, %v369
        %v373 = vadd.f32 %v367, %v369
        %v374 = vmul.f32 %v370, 0.5
        %v375 = vmul.f32 %v371, 0.5
        %v376 = vmul.f32 %v372, 0.5
        %v377 = vmul.f32 %v373, 0.5
        %v378 = vtanh.pop %v374
        %v379 = vtanh.pop %v375
        %v380 = vtanh.pop %v376
        %v381 = vtanh.pop %v377
        %v382 = vadd.f32 %v378, 1.0
        %v383 = vadd.f32 %v379, 1.0
        %v384 = vadd.f32 %v380, 1.0
        %v385 = vadd.f32 %v381, 1.0
        %v386 = vmul.f32 %v382, 0.5
        %v387 = vmul.f32 %v383, 0.5
        %v388 = vmul.f32 %v384, 0.5
        %v389 = vmul.f32 %v385, 0.5
        %390 = vst [vmem:[%s204] sm:$0xff] %v386
        %391 = vst [vmem:[%s204 + $0x8] sm:$0xff] %v387
        %392 = vst [vmem:[%s204 + $0x10] sm:$0xff] %v388
        %393 = vst [vmem:[%s204 + $0x18] sm:$0xff] %v389
        %s394 = sand.u32 %s98, 1
        %s395 = scalar_lea.sflag [#allocation5], %s394
        %s396 = sand.u32 %s98, 1
        %s397 = smul.addr %s396, 32
        %s398 = scalar_lea.vmem [#allocation8], %s397
        // Predicated region
        $region41: #{tpu_custom_call.1} parent=31 // pred_check
          %p399 = pneg %p108
        $region42: #{tpu_custom_call.1} parent=31 // pred_check_branch
          %401 = sbr.rel (%p399) target = $region44
        $region43: #{tpu_custom_call.1} parent=31 // pred_region
          %s402 = smul.u32 2, %s22
          %s404 = ssub.s32 512, 512
          %405 = vsyncadd %s395, %s404
          %s406 = smul.addr %s402, 2
          %s407 = smul.addr %s406, 128
          %s408 = scalar_lea.hbm %s3, %s407
          %s409 = sshll.u32 %s398, 4
          %s410 = int_to_ptr.vmem [resolvable:$true] %s409
          %415 = dma.vmem_to_hbm [thread:$0]  %s410, 512, %s408, %s395, 128, 128, 8
        $region44: #{tpu_custom_call.1} parent=31 // pred_fallthru
          _
      $region32: #{tpu_custom_call.1} parent=5 // pred_fallthru
        _
      %p416 = scmp.le.s32.totalorder 2, %s17
      // Predicated region
      $region45: #{tpu_custom_call.1} parent=5 // pred_check
        %p417 = pneg %p416
      $region46: #{tpu_custom_call.1} parent=5 // pred_check_branch
        %419 = sbr.rel (%p417) target = $region48
      $region47: #{tpu_custom_call.1} parent=5 // pred_region
        %s420 = ssub.s32 %s17, 2
        // Predicated region
        $region49: #{tpu_custom_call.1} parent=47 // pred_check
          %p421 = pneg %p114
        $region50: #{tpu_custom_call.1} parent=47 // pred_check_branch
          %423 = sbr.rel (%p421) target = $region52
        $region51: #{tpu_custom_call.1} parent=47 // pred_region
          %s424 = sand.u32 %s99, 1
          %s425 = scalar_lea.sflag [#allocation5], %s424
          %s426 = sand.u32 %s99, 1
          %s427 = smul.addr %s426, 32
          %s428 = scalar_lea.vmem [#allocation8], %s427
          %429 = dma.done %s425, 512
        $region52: #{tpu_custom_call.1} parent=47 // pred_fallthru
          _
      $region48: #{tpu_custom_call.1} parent=5 // pred_fallthru
        _
    $region6: #{tpu_custom_call.1} parent=1 // loop_footer
      %s21 = sadd.s32 1, %s17
    $region7: #{tpu_custom_call.1} parent=1 // loop_footer_branch
      %16 = sbr.rel target = $region3
    $region8: #{tpu_custom_call.1} parent=1 // loop_exit
      _
    %430 = vsyncpa [#allocation4], 1
    %s431 = scalar_lea.sflag [#allocation4], 1
    %432 = vsyncpa %s431, 1
    %433 = vsyncpa [#allocation5], 1
    %s434 = scalar_lea.sflag [#allocation5], 1
    %435 = vsyncpa %s434, 1
    %436 = vsyncpa [#allocation6], 1
    %s437 = scalar_lea.sflag [#allocation6], 1
    %438 = vsyncpa %s437, 1

</llo_original>
